<compile_context>
chip_gen: v7x
topology: tpu7x:2x2x1
jax: 0.10.0
libtpu: 0.0.40
codegen_flags: <defaults>
</compile_context>

<pallas_src>
import math

import jax
import jax.numpy as jnp
from jax.experimental import pallas as pl
from jax.experimental.pallas import tpu as pltpu


# ----------------------------------------------------------------------------
# Kernel: elementwise add of a streamed PE block, broadcast over batch.
#   x_ref / o_ref : (tS, B, D)
#   pe_ref        : (tS, D)
# ----------------------------------------------------------------------------
def _pe_add_kernel(x_ref, pe_ref, o_ref):
    o_ref[...] = x_ref[...] + pe_ref[...][:, None, :]


# ----------------------------------------------------------------------------
# Host-side helpers
# ----------------------------------------------------------------------------
def make_sinusoidal_pe(max_len: int, d_model: int) -> jnp.ndarray:
    """Equivalent of the module's registered buffer `pe` (shape (max_len, d_model)).

    pe[pos, 2i]   = sin(pos / 10000^(2i/d_model))
    pe[pos, 2i+1] = cos(pos / 10000^(2i/d_model))

    Assumes even d_model (the PyTorch reference also errors on odd d_model).
    """
    position = jnp.arange(max_len, dtype=jnp.float32)[:, None]            # (L, 1)
    div_term = jnp.exp(jnp.arange(0, d_model, 2, dtype=jnp.float32)
                       * (-math.log(10000.0) / d_model))                   # (D/2,)
    angles = position * div_term                                           # (L, D/2)
    pe = jnp.stack([jnp.sin(angles), jnp.cos(angles)], axis=-1)            # (L, D/2, 2)
    return pe.reshape(max_len, d_model).astype(jnp.float32)


def _device_vmem_capacity_bytes() -> int:
    try:
        return int(pltpu.get_tpu_info().vmem_capacity_bytes)
    except Exception:
        return 64 << 20   # conservative (v7x-sized) fallback


def _pick_seq_tile(S: int, B: int, D: int, itemsize: int, budget_bytes: int) -> int:
    """Sequence-axis tile: multiple of 8 (PE block sublane constraint), sized to a
    VMEM budget, and capped so the grid has >= 2 steps whenever S allows."""
    if S <= 8:
        return S                                   # full extent (tiny inputs)
    pos_bytes = max(1, B * D * itemsize)           # bytes of x per sequence position
    t = budget_bytes // pos_bytes
    t = max(8, (t // 8) * 8)
    half = max(8, (pl.cdiv(S, 2) // 8) * 8)        # guarantee >= 2 grid steps
    t = min(t, half, ((S + 7) // 8) * 8)
    return int(t)


# ----------------------------------------------------------------------------
# Forward pass (matches PositionalEncoding.forward, eval mode)
# ----------------------------------------------------------------------------
def positional_encoding_forward(x: jnp.ndarray, pe_table: jnp.ndarray) -> jnp.ndarray:
    """x: (seq_len, batch, d_model) -> x + pe[:seq_len]  (dropout = identity)."""
    S, B, D = x.shape
    pe = pe_table[:S].astype(x.dtype)              # (S, D); tiny vs. x traffic

    cap = _device_vmem_capacity_bytes()
    budget = (4 << 20) if cap <= (64 << 20) else (8 << 20)   # v7x vs v5e/v6e
    itemsize = jnp.dtype(x.dtype).itemsize
    tS = _pick_seq_tile(S, B, D, itemsize, budget)
    grid = (pl.cdiv(S, tS),)

    block_bytes = tS * B * D * itemsize
    # double-buffered x-in + out + pe-in, with headroom; never exceed 3/4 of VMEM
    vmem_limit = int(min(cap * 3 // 4, max(32 << 20, 6 * block_bytes)))

    out = pl.pallas_call(
        _pe_add_kernel,
        out_shape=jax.ShapeDtypeStruct((S, B, D), x.dtype),
        grid=grid,
        in_specs=[
            pl.BlockSpec((tS, B, D), lambda i: (i, 0, 0)),   # x, tiled over S
            pl.BlockSpec((tS, D), lambda i: (i, 0)),          # PE, streamed over S
        ],
        out_specs=pl.BlockSpec((tS, B, D), lambda i: (i, 0, 0)),
        input_output_aliases={0: 0},                          # add in place on x
        compiler_params=pltpu.CompilerParams(
            dimension_semantics=("parallel",),
            vmem_limit_bytes=vmem_limit,
        ),
    )(x, pe)
    return out

    # TODO(synk): training-mode dropout (p=0.1) would need pltpu.prng_* inside the
    # kernel; eval/inference semantics (identity) are implemented here.


# ----------------------------------------------------------------------------
if __name__ == "__main__":
    max_len = 5000
    key = jax.random.PRNGKey(0)
    k1, k2, k3 = jax.random.split(key, 3)

    # Case 1: small shapes matching the module's (seq_len, batch, d_model) layout.
    S, B, D = 8, 2, 32
    x = jax.random.normal(k1, (S, B, D), jnp.float32)
    pe_table = make_sinusoidal_pe(max_len, D)
    y = positional_encoding_forward(x, pe_table)
    jax.block_until_ready(y)
    ref = x + pe_table[:S][:, None, :]
    assert y.shape == (S, B, D)
    assert bool(jnp.all(jnp.isfinite(y)))
    assert bool(jnp.allclose(y, ref, atol=1e-6, rtol=1e-6))

    # Case 2: exercises the tiled path with a 2-step grid (tS = 8).
    S2, B2, D2 = 16, 16, 64
    x2 = jax.random.normal(k2, (S2, B2, D2), jnp.float32)
    pe2 = make_sinusoidal_pe(max_len, D2)
    y2 = positional_encoding_forward(x2, pe2)
    jax.block_until_ready(y2)
    assert bool(jnp.allclose(y2, x2 + pe2[:S2][:, None, :], atol=1e-6, rtol=1e-6))

    # Case 3: ragged sequence length (cdiv grid, masked last block), bf16 in-dtype.
    S3, B3, D3 = 20, 4, 128
    x3 = jax.random.normal(k3, (S3, B3, D3), jnp.float32).astype(jnp.bfloat16)
    pe3 = make_sinusoidal_pe(max_len, D3)
    y3 = positional_encoding_forward(x3, pe3)
    jax.block_until_ready(y3)
    ref3 = x3 + pe3[:S3].astype(jnp.bfloat16)[:, None, :]
    assert y3.dtype == jnp.bfloat16
    assert bool(jnp.allclose(y3.astype(jnp.float32), ref3.astype(jnp.float32),
                             atol=1e-2, rtol=1e-2))

    print("KERNEL_OK")
</pallas_src>

<mosaic_0001>
module attributes {stable_mosaic.version = 11 : i64} {
  func.func @_pe_add_kernel(%arg0: i32, %arg1: memref<8x2x32xf32, #tpu.memory_space<vmem>>, %arg2: memref<8x32xf32, #tpu.memory_space<vmem>>, %arg3: memref<8x2x32xf32, #tpu.memory_space<vmem>>) attributes {dimension_semantics = [#tpu.dimension_semantics<parallel>], iteration_bounds = array<i64: 1>, scalar_prefetch = 0 : i64, scratch_operands = 0 : i64, tpu.core_type = #tpu.core_type<tc>, window_params = [{transform_indices = @transform_0, window_bounds = array<i64: 8, 2, 32>}, {transform_indices = @transform_1, window_bounds = array<i64: 8, 32>}, {transform_indices = @transform_2, window_bounds = array<i64: 8, 2, 32>}]} {
    %c0 = arith.constant 0 : index
    %c0_0 = arith.constant 0 : index
    %c0_1 = arith.constant 0 : index
    %0 = vector.load %arg1[%c0, %c0_0, %c0_1] : memref<8x2x32xf32, #tpu.memory_space<vmem>>, vector<8x2x32xf32>
    %c0_2 = arith.constant 0 : index
    %c0_3 = arith.constant 0 : index
    %1 = vector.load %arg2[%c0_2, %c0_3] : memref<8x32xf32, #tpu.memory_space<vmem>>, vector<8x32xf32>
    %2 = vector.shape_cast %1 : vector<8x32xf32> to vector<8x1x32xf32>
    %3 = vector.broadcast %2 : vector<8x1x32xf32> to vector<8x2x32xf32>
    %4 = arith.addf %0, %3 : vector<8x2x32xf32>
    %c0_4 = arith.constant 0 : index
    %c0_5 = arith.constant 0 : index
    %c0_6 = arith.constant 0 : index
    %5 = vector.load %arg3[%c0_4, %c0_5, %c0_6] : memref<8x2x32xf32, #tpu.memory_space<vmem>>, vector<8x2x32xf32>
    tpu.vector_store %arg3[%c0_4, %c0_5, %c0_6], %4 {strides = array<i32>} : memref<8x2x32xf32, #tpu.memory_space<vmem>>, vector<8x2x32xf32>,
    return
  }
  func.func @transform_0(%arg0: i32) -> (i32, i32, i32) {
    %c0_i32 = arith.constant 0 : i32
    %c0_i32_0 = arith.constant 0 : i32
    %c0_i32_1 = arith.constant 0 : i32
    return %arg0, %c0_i32, %c0_i32_0 : i32, i32, i32
  }
  func.func @transform_1(%arg0: i32) -> (i32, i32) {
    %c0_i32 = arith.constant 0 : i32
    %c0_i32_0 = arith.constant 0 : i32
    return %arg0, %c0_i32 : i32, i32
  }
  func.func @transform_2(%arg0: i32) -> (i32, i32, i32) {
    %c0_i32 = arith.constant 0 : i32
    %c0_i32_0 = arith.constant 0 : i32
    %c0_i32_1 = arith.constant 0 : i32
    return %arg0, %c0_i32, %c0_i32_0 : i32, i32, i32
  }
}

</mosaic_0001>

<llo_original>
// kernel: tpu_custom_call.1
$region0: #{tpu_custom_call.1}
  #allocation0 [shape = 'u32[]', space=smem, size = 0x4, offset = 0x4, fixed_abs, tag = 'smem constant byte address 0x4 - core index']
  #allocation1 [shape = 'u32[144,128]{1,0:T(1,128)}', space=vmem, size = 0x12000, scoped, tag = 'internal scratch']
  %s0 = inlined_call_operand.hbm [shape: f32[8,2,32], index: 0, kind: input, shape index: {}, may-alias: {0,2}]
  %s1 = inlined_call_operand.vmem [shape: f32[8,32], index: 1, kind: input, shape index: {}]
  %s2 = inlined_call_operand.hbm [shape: f32[8,2,32], index: 2, kind: output, shape index: {}, may-alias: {0,2}]
  %s3 = sld [smem:[#allocation0]]
  $region22: #{tpu_custom_call.1} parent=0
    _
  %s5 = ssub.s32 1, %s3
  %s6 = scalar_select 0, %s5, %s3
  $region1: #{tpu_custom_call.1} parent=0
    #allocation2 [shape = 'u8[8192]{0}', space=vmem, size = 0x2000, scoped, tag = 'input window, operand 0, single buffered']
    #allocation3 [shape = 's32[1]{0}', space=sflag, size = 0x4, scoped, tag = 'scoped memory for tpu_custom_call.1']
    #allocation4 [shape = 's32[1]{0}', space=sflag, size = 0x4, scoped, tag = 'scoped memory for tpu_custom_call.1']
    #allocation5 [shape = 'u8[8192]{0}', space=vmem, size = 0x2000, scoped, tag = 'output window, operand 0, single buffered']
    %7 = vsyncpa [#allocation3], 0
    %8 = vsyncpa [#allocation4], 0
    // Predicated region
    $region2: #{tpu_custom_call.1} parent=1 // pred_check
      _
    $region3: #{tpu_custom_call.1} parent=1 // pred_check_branch
      %10 = sbr.rel (0) target = $region5
    $region4: #{tpu_custom_call.1} parent=1 // pred_region
      %s12 = ssub.s32 256, 256
      %13 = vsyncadd [#allocation3], %s12
      %s14 = sshll.u32 [#allocation2], 4
      %s15 = int_to_ptr.vmem [resolvable:$true] %s14
      %20 = dma.hbm_to_vmem [thread:$0]  %s0, 256, %s15, [#allocation3], 32, 32, 2
    $region5: #{tpu_custom_call.1} parent=1 // pred_fallthru
      _
    // Predicated region
    $region6: #{tpu_custom_call.1} parent=1 // pred_check
      _
    $region7: #{tpu_custom_call.1} parent=1 // pred_check_branch
      %22 = sbr.rel (0) target = $region9
    $region8: #{tpu_custom_call.1} parent=1 // pred_region
      _
    $region9: #{tpu_custom_call.1} parent=1 // pred_fallthru
      _
    // Predicated region
    $region10: #{tpu_custom_call.1} parent=1 // pred_check
      _
    $region11: #{tpu_custom_call.1} parent=1 // pred_check_branch
      %24 = sbr.rel (0) target = $region13
    $region12: #{tpu_custom_call.1} parent=1 // pred_region
      %25 = dma.done [#allocation3], 256
    $region13: #{tpu_custom_call.1} parent=1 // pred_fallthru
      _
    %v26 = vld [vmem:[#allocation2] sm:$0x3]
    %v27 = vld [vmem:[#allocation2 + $0x2] sm:$0x3]
    %v28 = vld [vmem:[#allocation2 + $0x4] sm:$0x3]
    %v29 = vld [vmem:[#allocation2 + $0x6] sm:$0x3]
    %v30 = vld [vmem:[#allocation2 + $0x8] sm:$0x3]
    %v31 = vld [vmem:[#allocation2 + $0xa] sm:$0x3]
    %v32 = vld [vmem:[#allocation2 + $0xc] sm:$0x3]
    %v33 = vld [vmem:[#allocation2 + $0xe] sm:$0x3]
    %v34 = vld [vmem:[%s1] sm:$0xff]
    %v36 = vcombine.high %v34, %v34
    %v38 = vunpack.c.l.s4 1966171168
    %v39 = vunpack.c.0.s8 %v38
    %v40 = vlaneseq
    %v41 = vshrl.u32 %v40, 7
    %v42 = vsub.s32 %v39, %v41
    %v43 = vrot.slane %v34, %v42
    %v45 = vunpack.c.l.s4 1966171168
    %v46 = vunpack.c.0.s8 %v45
    %v47 = vlaneseq
    %v48 = vshrl.u32 %v47, 7
    %v49 = vsub.s32 %v46, %v48
    %v50 = vrot.slane %v36, %v49
    %v51 = vcombine.high %v43, %v43
    %v52 = vcombine.high %v50, %v50
    %v54 = vunpack.c.l.s4 1966171168
    %v55 = vunpack.c.0.s8 %v54
    %v56 = vlaneseq
    %v57 = vshrl.u32 %v56, 7
    %v58 = vsub.s32 %v55, %v57
    %v59 = vrot.slane %v43, %v58
    %v61 = vunpack.c.l.s4 1966171168
    %v62 = vunpack.c.0.s8 %v61
    %v63 = vlaneseq
    %v64 = vshrl.u32 %v63, 7
    %v65 = vsub.s32 %v62, %v64
    %v66 = vrot.slane %v50, %v65
    %v68 = vunpack.c.l.s4 1966171168
    %v69 = vunpack.c.0.s8 %v68
    %v70 = vlaneseq
    %v71 = vshrl.u32 %v70, 7
    %v72 = vsub.s32 %v69, %v71
    %v73 = vrot.slane %v51, %v72
    %v75 = vunpack.c.l.s4 1966171168
    %v76 = vunpack.c.0.s8 %v75
    %v77 = vlaneseq
    %v78 = vshrl.u32 %v77, 7
    %v79 = vsub.s32 %v76, %v78
    %v80 = vrot.slane %v52, %v79
    %v81 = vcombine.high %v59, %v59
    %v82 = vcombine.high %v66, %v66
    %v83 = vcombine.high %v73, %v73
    %v84 = vcombine.high %v80, %v80
    %v85 = vlaneseq
    %v86 = vshrl.u32 %v85, 7
    %v87 = vsub.s32 0, %v86
    %v88 = vrot.slane %v59, %v87
    %v89 = vlaneseq
    %v90 = vshrl.u32 %v89, 7
    %v91 = vsub.s32 0, %v90
    %v92 = vrot.slane %v73, %v91
    %v93 = vlaneseq
    %v94 = vshrl.u32 %v93, 7
    %v95 = vsub.s32 0, %v94
    %v96 = vrot.slane %v81, %v95
    %v97 = vlaneseq
    %v98 = vshrl.u32 %v97, 7
    %v99 = vsub.s32 0, %v98
    %v100 = vrot.slane %v83, %v99
    %v101 = vlaneseq
    %v102 = vshrl.u32 %v101, 7
    %v103 = vsub.s32 0, %v102
    %v104 = vrot.slane %v66, %v103
    %v105 = vlaneseq
    %v106 = vshrl.u32 %v105, 7
    %v107 = vsub.s32 0, %v106
    %v108 = vrot.slane %v80, %v107
    %v109 = vlaneseq
    %v110 = vshrl.u32 %v109, 7
    %v111 = vsub.s32 0, %v110
    %v112 = vrot.slane %v82, %v111
    %v113 = vlaneseq
    %v114 = vshrl.u32 %v113, 7
    %v115 = vsub.s32 0, %v114
    %v116 = vrot.slane %v84, %v115
    %v125 = vadd.f32 %v26, %v88
    %v126 = vadd.f32 %v27, %v92
    %v127 = vadd.f32 %v28, %v96
    %v128 = vadd.f32 %v29, %v100
    %v129 = vadd.f32 %v30, %v104
    %v130 = vadd.f32 %v31, %v108
    %v131 = vadd.f32 %v32, %v112
    %v132 = vadd.f32 %v33, %v116
    %vm133 = vcmask 254976
    %134 = vst.msk [vmem:[#allocation5] sm:$0x3] %vm133, %v125
    %135 = vst.msk [vmem:[#allocation5 + $0x2] sm:$0x3] %vm133, %v126
    %136 = vst.msk [vmem:[#allocation5 + $0x4] sm:$0x3] %vm133, %v127
    %137 = vst.msk [vmem:[#allocation5 + $0x6] sm:$0x3] %vm133, %v128
    %138 = vst.msk [vmem:[#allocation5 + $0x8] sm:$0x3] %vm133, %v129
    %139 = vst.msk [vmem:[#allocation5 + $0xa] sm:$0x3] %vm133, %v130
    %140 = vst.msk [vmem:[#allocation5 + $0xc] sm:$0x3] %vm133, %v131
    %141 = vst.msk [vmem:[#allocation5 + $0xe] sm:$0x3] %vm133, %v132
    // Predicated region
    $region14: #{tpu_custom_call.1} parent=1 // pred_check
      _
    $region15: #{tpu_custom_call.1} parent=1 // pred_check_branch
      %143 = sbr.rel (0) target = $region17
    $region16: #{tpu_custom_call.1} parent=1 // pred_region
      %s145 = ssub.s32 256, 256
      %146 = vsyncadd [#allocation4], %s145
      %s147 = sshll.u32 [#allocation5], 4
      %s148 = int_to_ptr.vmem [resolvable:$true] %s147
      %153 = dma.vmem_to_hbm [thread:$0]  %s148, 256, %s2, [#allocation4], 32, 32, 2
    $region17: #{tpu_custom_call.1} parent=1 // pred_fallthru
      _
    // Predicated region
    $region18: #{tpu_custom_call.1} parent=1 // pred_check
      _
    $region19: #{tpu_custom_call.1} parent=1 // pred_check_branch
      %155 = sbr.rel (0) target = $region21
    $region20: #{tpu_custom_call.1} parent=1 // pred_region
      %156 = dma.done [#allocation4], 256
    $region21: #{tpu_custom_call.1} parent=1 // pred_fallthru
      _
    %157 = vsyncpa [#allocation3], 1
    %158 = vsyncpa [#allocation4], 1

</llo_original>
